<compile_context>
chip_gen: v7x
topology: tpu7x:2x2x1
jax: 0.10.0
libtpu: 0.0.40
codegen_flags: <defaults>
</compile_context>

<pallas_src>
import functools

import jax
import jax.numpy as jnp
from jax.experimental import pallas as pl
from jax.experimental.pallas import tpu as pltpu


def _round_up(v, m):
    return ((v + m - 1) // m) * m


def _vmem_capacity_bytes():
    try:
        return int(pltpu.get_tpu_info().vmem_capacity_bytes)
    except Exception:
        return 64 * 1024 * 1024  # conservative (v7x per-core) fallback


# --------------------------------------------------------------------------- #
# Kernels
# --------------------------------------------------------------------------- #
def gnn_fused_kernel(x_ref, adj_ref, wt_ref, b_ref, o_ref, *, num_layers, unroll):
    # x_ref:   (TB, Np, Hp)  node features, matmul dtype
    # adj_ref: (TB, Np, Np)  adjacency, matmul dtype
    # wt_ref:  (L, Hp, Hp)   pre-transposed weights (W^T), matmul dtype, resident
    # b_ref:   (L, 1, Hp)    biases, f32, resident
    # o_ref:   (TB, Np, Hp)  output, out dtype
    mm_dtype = adj_ref.dtype
    x = x_ref[...].astype(jnp.float32)  # f32 carry across layers

    def layer_step(l, x_f32):
        # Linear (x @ W^T + b) with f32 accumulation on the MXU, ReLU on the VPU.
        h = jnp.einsum(
            "bnk,kh->bnh", x_f32.astype(mm_dtype), wt_ref[l],
            preferred_element_type=jnp.float32,
        ) + b_ref[l]
        h = jnp.maximum(h, 0.0)
        # Graph propagation: adj @ h.
        return jnp.einsum(
            "bnm,bmh->bnh", adj_ref[...], h.astype(mm_dtype),
            preferred_element_type=jnp.float32,
        )

    if unroll:
        for l in range(num_layers):
            x = layer_step(l, x)
    else:
        x = jax.lax.fori_loop(0, num_layers, layer_step, x)

    o_ref[...] = x.astype(o_ref.dtype)


def gnn_stream_kernel(x_ref, adj_hbm, wt_ref, b_ref, o_ref,
                      adj_buf, adj_sem, x_scr, h_scr, *, num_layers, tile_n):
    # x_ref:   (1, Np, Hp) VMEM block, matmul dtype
    # adj_hbm: (B, Np, Np) raw HBM ref (memory_space=pl.ANY)
    # wt_ref:  (L, Hp, Hp) resident W^T, matmul dtype
    # b_ref:   (L, 1, Hp)  resident biases, f32
    # o_ref:   (1, Np, Hp) output block
    # adj_buf: (2, tile_n, Np) VMEM double buffer for adj row tiles
    # adj_sem: (2,) DMA semaphores
    # x_scr:   (Np, Hp) f32 carry of node features
    # h_scr:   (Np, Hp) matmul-dtype post-ReLU activations
    bi = pl.program_id(0)
    n_pad = x_scr.shape[0]
    n_tiles = n_pad // tile_n
    mm_dtype = h_scr.dtype

    x_scr[...] = x_ref[0].astype(jnp.float32)

    def fetch(t, slot):
        pltpu.make_async_copy(
            adj_hbm.at[bi, pl.ds(t * tile_n, tile_n), :],
            adj_buf.at[slot],
            adj_sem.at[slot],
        ).start()

    # TODO(synk): for very deep networks replace this static layer unroll with a
    # pl.loop + dynamic wt_ref[l]/b_ref[l] indexing to bound code size.
    for layer in range(num_layers):
        last_layer = layer == num_layers - 1

        # Linear + ReLU for all nodes (linear-sized, stays VMEM-resident; only
        # the quadratic adj term is streamed from HBM).
        h = jnp.dot(
            x_scr[...].astype(mm_dtype), wt_ref[layer],
            preferred_element_type=jnp.float32,
        ) + b_ref[layer]
        h_scr[...] = jnp.maximum(h, 0.0).astype(mm_dtype)

        fetch(0, 0)  # prime the double buffer for this layer's adj row sweep

        @pl.loop(0, n_tiles)
        def _(t):
            slot = t & 1
            row = pl.multiple_of(t * tile_n, tile_n)
            pltpu.make_async_copy(
                adj_hbm.at[bi, pl.ds(row, tile_n), :],
                adj_buf.at[slot],
                adj_sem.at[slot],
            ).wait()

            @pl.when(t + 1 < n_tiles)
            def _prefetch():
                fetch(t + 1, 1 - slot)

            out_tile = jnp.dot(
                adj_buf[slot], h_scr[...], preferred_element_type=jnp.float32
            )
            if last_layer:
                o_ref[0, pl.ds(row, tile_n), :] = out_tile.astype(o_ref.dtype)
            else:
                x_scr[pl.ds(row, tile_n), :] = out_tile


# --------------------------------------------------------------------------- #
# Wrapper
# --------------------------------------------------------------------------- #
@functools.partial(
    jax.jit,
    static_argnames=("matmul_dtype", "out_dtype", "adj_streaming", "stream_tile_n"),
)
def gnn_forward(x, adj, weights, biases, matmul_dtype=jnp.bfloat16,
                out_dtype=None, adj_streaming=None, stream_tile_n=None):
    B, N, H = x.shape
    L = int(weights.shape[0])
    out_dtype = matmul_dtype if out_dtype is None else out_dtype
    if L == 0:
        return x.astype(out_dtype)

    mm_item = jnp.dtype(matmul_dtype).itemsize
    out_item = jnp.dtype(out_dtype).itemsize
    sub = 8 if mm_item == 4 else 16  # sublane packing for the matmul dtype

    # Lane-dense feature dim; 128-aligned node dim for medium/large graphs so
    # adj's lane / contraction dim fills the MXU (16-aligned for tiny graphs).
    Hp = _round_up(H, 128)
    Np = _round_up(N, 128) if N >= 64 else _round_up(N, 16)

    # Pre-transpose weights once outside the grid (no per-step XLU vxpose).
    wt = jnp.swapaxes(weights, -1, -2)  # (L, H_in, H_out)

    # Zero-pad (exact: zero adj rows/cols mask padded nodes; zero W/b columns
    # keep padded feature lanes identically zero).
    x_p = jnp.pad(x, ((0, 0), (0, Np - N), (0, Hp - H))).astype(matmul_dtype)
    adj_p = jnp.pad(adj, ((0, 0), (0, Np - N), (0, Np - N))).astype(matmul_dtype)
    wt_p = jnp.pad(wt, ((0, 0), (0, Hp - H), (0, Hp - H))).astype(matmul_dtype)
    b_p = jnp.pad(biases, ((0, 0), (0, 0), (0, Hp - H))).astype(jnp.float32)

    # --- VMEM budgeting (per TensorCore) ------------------------------------
    vmem_cap = _vmem_capacity_bytes()
    vmem_ceiling = (vmem_cap * 7) // 8  # ~112 MiB v5e/v6e, ~56 MiB v7x
    headroom = 4 << 20

    # Buffered(1) -> single resident copy of the parameters.
    params_bytes = L * Hp * Hp * mm_item + L * 8 * Hp * 4
    per_elem = (
        2 * (Np * Hp * mm_item + Np * Np * mm_item + Np * Hp * out_item)  # dbl-buffered blocks
        + Np * Hp * (4 + 4 + 4 + mm_item)   # f32 carry + f32 h + f32 out + mm-dtype h temps
        + Np * Np * mm_item                 # adj value materialized for the layer loop
    )
    budget = vmem_ceiling - params_bytes - headroom
    fused_fits = budget >= per_elem
    use_streaming = (not fused_fits) if adj_streaming is None else bool(adj_streaming)
    unroll_layers = L <= 4

    wt_spec = pl.BlockSpec((L, Hp, Hp), lambda bi: (0, 0, 0),
                           pipeline_mode=pl.Buffered(1))
    b_spec = pl.BlockSpec((L, 1, Hp), lambda bi: (0, 0, 0),
                          pipeline_mode=pl.Buffered(1))

    if not use_streaming:
        # ------------------------- fused path --------------------------------
        tb = max(1, min(B, budget // per_elem))
        Bp = _round_up(B, tb)
        if Bp > B:
            x_p = jnp.pad(x_p, ((0, Bp - B), (0, 0), (0, 0)))
            adj_p = jnp.pad(adj_p, ((0, Bp - B), (0, 0), (0, 0)))

        est = tb * per_elem + params_bytes + headroom
        vmem_limit = int(min(max(est * 3 // 2, 32 << 20), vmem_ceiling))

        kernel = functools.partial(
            gnn_fused_kernel, num_layers=L, unroll=unroll_layers)
        out_p = pl.pallas_call(
            kernel,
            out_shape=jax.ShapeDtypeStruct((Bp, Np, Hp), out_dtype),
            grid_spec=pltpu.PrefetchScalarGridSpec(
                num_scalar_prefetch=0,
                grid=(Bp // tb,),
                in_specs=[
                    pl.BlockSpec((tb, Np, Hp), lambda bi: (bi, 0, 0)),  # x
                    pl.BlockSpec((tb, Np, Np), lambda bi: (bi, 0, 0)),  # adj
                    wt_spec,                                            # W^T resident
                    b_spec,                                             # b resident
                ],
                out_specs=pl.BlockSpec((tb, Np, Hp), lambda bi: (bi, 0, 0)),
            ),
            compiler_params=pltpu.CompilerParams(
                dimension_semantics=("parallel",),  # batch tiles shard across TCs
                vmem_limit_bytes=vmem_limit,
            ),
        )(x_p, adj_p, wt_p, b_p)
    else:
        # ----------------------- adj-streaming path --------------------------
        if stream_tile_n is not None:
            tile_n = int(stream_tile_n)
            assert tile_n % sub == 0 and Np % tile_n == 0, (
                "stream_tile_n must be a multiple of the sublane packing and divide Np")
        else:
            fixed = (2 * Np * Hp * (mm_item + out_item)   # x / out blocks (dbl-buffered)
                     + Np * Hp * (4 + mm_item + 4)        # x_scr, h_scr, f32 h temp
                     + params_bytes + headroom)
            avail = max(vmem_ceiling - fixed, 2 * sub * Np * mm_item)
            tile_n = sub
            for cand in (512, 256, 128, 64, 32, 16, 8):
                if cand >= sub and Np % cand == 0 and 2 * cand * Np * mm_item <= avail:
                    tile_n = cand
                    break

        est = (2 * Np * Hp * (mm_item + out_item)
               + Np * Hp * (4 + mm_item + 4)
               + 2 * tile_n * Np * mm_item
               + tile_n * Hp * 4
               + params_bytes + headroom)
        vmem_limit = int(min(max(est * 3 // 2, 32 << 20), vmem_ceiling))

        kernel = functools.partial(gnn_stream_kernel, num_layers=L, tile_n=tile_n)
        out_p = pl.pallas_call(
            kernel,
            out_shape=jax.ShapeDtypeStruct((B, Np, Hp), out_dtype),
            grid_spec=pltpu.PrefetchScalarGridSpec(
                num_scalar_prefetch=0,
                grid=(B,),
                in_specs=[
                    pl.BlockSpec((1, Np, Hp), lambda bi: (bi, 0, 0)),  # x
                    pl.BlockSpec(memory_space=pl.ANY),                 # adj stays in HBM
                    wt_spec,                                           # W^T resident
                    b_spec,                                            # b resident
                ],
                out_specs=pl.BlockSpec((1, Np, Hp), lambda bi: (bi, 0, 0)),
                scratch_shapes=[
                    pltpu.VMEM((2, tile_n, Np), matmul_dtype),  # adj row-tile dbl buffer
                    pltpu.SemaphoreType.DMA((2,)),
                    pltpu.VMEM((Np, Hp), jnp.float32),          # x carry (f32)
                    pltpu.VMEM((Np, Hp), matmul_dtype),         # h (MXU input dtype)
                ],
            ),
            compiler_params=pltpu.CompilerParams(
                dimension_semantics=("parallel",),
                vmem_limit_bytes=vmem_limit,
            ),
        )(x_p, adj_p, wt_p, b_p)

    return out_p[:B, :N, :H]


# --------------------------------------------------------------------------- #
# References
# --------------------------------------------------------------------------- #
def gnn_forward_ref(x, adj, weights, biases):
    # Pure-JAX f32 reference matching the PyTorch module.
    for l in range(weights.shape[0]):
        x = jnp.maximum(jnp.einsum("bnh,oh->bno", x, weights[l]) + biases[l], 0.0)
        x = jnp.einsum("bnm,bmh->bnh", adj, x)
    return x


def gnn_forward_ref_mixed(x, adj, weights, biases, matmul_dtype):
    # Reference mirroring the kernel's mixed-precision numerics
    # (matmul-dtype MXU inputs, f32 accumulation, f32 bias add).
    xc = x.astype(matmul_dtype)
    adjc = adj.astype(matmul_dtype)
    out = x.astype(jnp.float32)
    for l in range(weights.shape[0]):
        w = weights[l].astype(matmul_dtype)
        h = jnp.einsum("bnh,oh->bno", xc, w,
                       preferred_element_type=jnp.float32) + biases[l]
        h = jnp.maximum(h, 0.0)
        out = jnp.einsum("bnm,bmh->bnh", adjc, h.astype(matmul_dtype),
                         preferred_element_type=jnp.float32)
        xc = out.astype(matmul_dtype)
    return out


def _assert_close(name, out, ref, rel):
    out_f = jnp.asarray(out, dtype=jnp.float32)
    ref_f = jnp.asarray(ref, dtype=jnp.float32)
    scale = float(jnp.maximum(jnp.max(jnp.abs(ref_f)), 1.0))
    err = float(jnp.max(jnp.abs(out_f - ref_f)))
    assert err <= rel * scale, f"{name}: max abs err {err:.3e} > {rel}*{scale:.3e}"


# --------------------------------------------------------------------------- #
# Demo / self-test
# --------------------------------------------------------------------------- #
if __name__ == "__main__":
    NUM_LAYERS = 2
    HIDDEN_DIM = 32
    BATCH = 2
    NUM_NODES = 8

    key = jax.random.PRNGKey(0)
    kx, kadj, kw, kb, kw2 = jax.random.split(key, 5)

    x = jax.random.normal(kx, (BATCH, NUM_NODES, HIDDEN_DIM), dtype=jnp.float32)
    adj = jax.random.uniform(kadj, (BATCH, NUM_NODES, NUM_NODES), dtype=jnp.float32)

    # Deterministic parameter init (Linear(hidden_dim, hidden_dim) per layer).
    weights = (
        jax.random.normal(kw, (NUM_LAYERS, HIDDEN_DIM, HIDDEN_DIM), dtype=jnp.float32)
        * (1.0 / jnp.sqrt(HIDDEN_DIM))
    )
    biases = (
        jax.random.normal(kb, (NUM_LAYERS, 1, HIDDEN_DIM), dtype=jnp.float32) * 0.01
    )

    ref_f32 = gnn_forward_ref(x, adj, weights, biases)

    # 1) f32 MXU path, fused (PyTorch-like semantics, f32 output).
    out_f32 = jax.block_until_ready(
        gnn_forward(x, adj, weights, biases, matmul_dtype=jnp.float32))
    assert out_f32.shape == (BATCH, NUM_NODES, HIDDEN_DIM)
    assert out_f32.dtype == jnp.float32
    _assert_close("fused f32", out_f32, ref_f32, rel=3e-4)

    # 2) Default path: bf16 MXU inputs + f32 accumulation, bf16 output.
    out_bf16 = jax.block_until_ready(gnn_forward(x, adj, weights, biases))
    assert out_bf16.dtype == jnp.bfloat16
    ref_bf16 = gnn_forward_ref_mixed(x, adj, weights, biases, jnp.bfloat16)
    _assert_close("fused bf16 (default)", out_bf16, ref_bf16, rel=2e-2)

    # 3) Adj-streaming (row-tiled manual double-buffered DMA) path, forced with
    #    a tiny tile so the pipeline and intermediate-layer writeback are
    #    exercised at small shapes.
    out_stream = jax.block_until_ready(
        gnn_forward(x, adj, weights, biases, matmul_dtype=jnp.float32,
                    adj_streaming=True, stream_tile_n=8))
    _assert_close("streaming f32", out_stream, ref_f32, rel=3e-4)

    # 4) Deeper network: exercises the lax.fori_loop layer path (bf16 default).
    deep_layers = 6
    weights_deep = (
        jax.random.normal(kw2, (deep_layers, HIDDEN_DIM, HIDDEN_DIM), dtype=jnp.float32)
        * (1.0 / jnp.sqrt(HIDDEN_DIM))
    )
    biases_deep = jnp.tile(biases[:1], (deep_layers, 1, 1))
    out_deep = jax.block_until_ready(gnn_forward(x, adj, weights_deep, biases_deep))
    ref_deep = gnn_forward_ref_mixed(x, adj, weights_deep, biases_deep, jnp.bfloat16)
    _assert_close("fused bf16 deep (fori_loop)", out_deep, ref_deep, rel=2e-2)

    print("KERNEL_OK")
</pallas_src>

<mosaic_0001>
module attributes {stable_mosaic.version = 11 : i64} {
  func.func @gnn_fused_kernel(%arg0: i32, %arg1: memref<2x16x128xf32, #tpu.memory_space<vmem>>, %arg2: memref<2x16x16xf32, #tpu.memory_space<vmem>>, %arg3: memref<2x128x128xf32, #tpu.memory_space<vmem>>, %arg4: memref<2x1x128xf32, #tpu.memory_space<vmem>>, %arg5: memref<2x16x128xf32, #tpu.memory_space<vmem>>) attributes {dimension_semantics = [#tpu.dimension_semantics<parallel>], iteration_bounds = array<i64: 1>, scalar_prefetch = 0 : i64, scratch_operands = 0 : i64, tpu.core_type = #tpu.core_type<tc>, window_params = [{transform_indices = @transform_0, window_bounds = array<i64: 2, 16, 128>}, {transform_indices = @transform_1, window_bounds = array<i64: 2, 16, 16>}, {pipeline_mode = #tpu.pipeline_mode<synchronous>, transform_indices = @transform_2, window_bounds = array<i64: 2, 128, 128>}, {pipeline_mode = #tpu.pipeline_mode<synchronous>, transform_indices = @transform_3, window_bounds = array<i64: 2, 1, 128>}, {transform_indices = @transform_4, window_bounds = array<i64: 2, 16, 128>}]} {
    %c0 = arith.constant 0 : index
    %c0_0 = arith.constant 0 : index
    %c0_1 = arith.constant 0 : index
    %0 = vector.load %arg1[%c0, %c0_0, %c0_1] : memref<2x16x128xf32, #tpu.memory_space<vmem>>, vector<2x16x128xf32>
    %c0_2 = arith.constant 0 : index
    %c0_3 = arith.constant 0 : index
    %c0_4 = arith.constant 0 : index
    %1 = vector.load %arg3[%c0_2, %c0_3, %c0_4] : memref<2x128x128xf32, #tpu.memory_space<vmem>>, vector<1x128x128xf32>
    %2 = vector.shape_cast %1 : vector<1x128x128xf32> to vector<128x128xf32>
    "tpu.trace_start"() <{level = 10 : i32, message = "bnk,kh->bnh"}> : () -> ()
    %cst = arith.constant dense<0.000000e+00> : vector<2x16x128xf32>
    %3 = tpu.matmul %0, %2, %cst {dimension_numbers = #tpu.dot_dimension_numbers<[2], [0], [0, 1], [1], [0, 0, 0, 1, 1, 1], [], []>} : vector<2x16x128xf32>, vector<128x128xf32>, vector<2x16x128xf32> -> vector<2x16x128xf32>
    "tpu.trace_stop"() : () -> ()
    %c0_5 = arith.constant 0 : index
    %c0_6 = arith.constant 0 : index
    %c0_7 = arith.constant 0 : index
    %4 = vector.load %arg4[%c0_5, %c0_6, %c0_7] : memref<2x1x128xf32, #tpu.memory_space<vmem>>, vector<1x1x128xf32>
    %5 = vector.shape_cast %4 : vector<1x1x128xf32> to vector<1x128xf32>
    %6 = vector.shape_cast %5 : vector<1x128xf32> to vector<1x1x128xf32>
    %7 = vector.broadcast %6 : vector<1x1x128xf32> to vector<2x16x128xf32>
    %8 = arith.addf %3, %7 : vector<2x16x128xf32>
    %cst_8 = arith.constant 0.000000e+00 : f32
    %9 = vector.broadcast %cst_8 : f32 to vector<2x16x128xf32>
    %10 = arith.maximumf %8, %9 : vector<2x16x128xf32>
    %c0_9 = arith.constant 0 : index
    %c0_10 = arith.constant 0 : index
    %c0_11 = arith.constant 0 : index
    %11 = vector.load %arg2[%c0_9, %c0_10, %c0_11] : memref<2x16x16xf32, #tpu.memory_space<vmem>>, vector<2x16x16xf32>
    "tpu.trace_start"() <{level = 10 : i32, message = "bnm,bmh->bnh"}> : () -> ()
    %cst_12 = arith.constant dense<0.000000e+00> : vector<2x16x128xf32>
    %12 = tpu.matmul %11, %10, %cst_12 {dimension_numbers = #tpu.dot_dimension_numbers<[2], [1], [1], [2], [0, 0, 0, 1, 1, 2], [0], [0]>} : vector<2x16x16xf32>, vector<2x16x128xf32>, vector<2x16x128xf32> -> vector<2x16x128xf32>
    "tpu.trace_stop"() : () -> ()
    %c1 = arith.constant 1 : index
    %c0_13 = arith.constant 0 : index
    %c0_14 = arith.constant 0 : index
    %13 = vector.load %arg3[%c1, %c0_13, %c0_14] : memref<2x128x128xf32, #tpu.memory_space<vmem>>, vector<1x128x128xf32>
    %14 = vector.shape_cast %13 : vector<1x128x128xf32> to vector<128x128xf32>
    "tpu.trace_start"() <{level = 10 : i32, message = "bnk,kh->bnh"}> : () -> ()
    %cst_15 = arith.constant dense<0.000000e+00> : vector<2x16x128xf32>
    %15 = tpu.matmul %12, %14, %cst_15 {dimension_numbers = #tpu.dot_dimension_numbers<[2], [0], [0, 1], [1], [0, 0, 0, 1, 1, 1], [], []>} : vector<2x16x128xf32>, vector<128x128xf32>, vector<2x16x128xf32> -> vector<2x16x128xf32>
    "tpu.trace_stop"() : () -> ()
    %c1_16 = arith.constant 1 : index
    %c0_17 = arith.constant 0 : index
    %c0_18 = arith.constant 0 : index
    %16 = vector.load %arg4[%c1_16, %c0_17, %c0_18] : memref<2x1x128xf32, #tpu.memory_space<vmem>>, vector<1x1x128xf32>
    %17 = vector.shape_cast %16 : vector<1x1x128xf32> to vector<1x128xf32>
    %18 = vector.shape_cast %17 : vector<1x128xf32> to vector<1x1x128xf32>
    %19 = vector.broadcast %18 : vector<1x1x128xf32> to vector<2x16x128xf32>
    %20 = arith.addf %15, %19 : vector<2x16x128xf32>
    %cst_19 = arith.constant 0.000000e+00 : f32
    %21 = vector.broadcast %cst_19 : f32 to vector<2x16x128xf32>
    %22 = arith.maximumf %20, %21 : vector<2x16x128xf32>
    %c0_20 = arith.constant 0 : index
    %c0_21 = arith.constant 0 : index
    %c0_22 = arith.constant 0 : index
    %23 = vector.load %arg2[%c0_20, %c0_21, %c0_22] : memref<2x16x16xf32, #tpu.memory_space<vmem>>, vector<2x16x16xf32>
    "tpu.trace_start"() <{level = 10 : i32, message = "bnm,bmh->bnh"}> : () -> ()
    %cst_23 = arith.constant dense<0.000000e+00> : vector<2x16x128xf32>
    %24 = tpu.matmul %23, %22, %cst_23 {dimension_numbers = #tpu.dot_dimension_numbers<[2], [1], [1], [2], [0, 0, 0, 1, 1, 2], [0], [0]>} : vector<2x16x16xf32>, vector<2x16x128xf32>, vector<2x16x128xf32> -> vector<2x16x128xf32>
    "tpu.trace_stop"() : () -> ()
    %c0_24 = arith.constant 0 : index
    %c0_25 = arith.constant 0 : index
    %c0_26 = arith.constant 0 : index
    %25 = vector.load %arg5[%c0_24, %c0_25, %c0_26] : memref<2x16x128xf32, #tpu.memory_space<vmem>>, vector<2x16x128xf32>
    tpu.vector_store %arg5[%c0_24, %c0_25, %c0_26], %24 {strides = array<i32>} : memref<2x16x128xf32, #tpu.memory_space<vmem>>, vector<2x16x128xf32>,
    return
  }
  func.func @transform_0(%arg0: i32) -> (i32, i32, i32) {
    %c0_i32 = arith.constant 0 : i32
    %c0_i32_0 = arith.constant 0 : i32
    %c0_i32_1 = arith.constant 0 : i32
    return %arg0, %c0_i32, %c0_i32_0 : i32, i32, i32
  }
  func.func @transform_1(%arg0: i32) -> (i32, i32, i32) {
    %c0_i32 = arith.constant 0 : i32
    %c0_i32_0 = arith.constant 0 : i32
    %c0_i32_1 = arith.constant 0 : i32
    return %arg0, %c0_i32, %c0_i32_0 : i32, i32, i32
  }
  func.func @transform_2(%arg0: i32) -> (i32, i32, i32) {
    %c0_i32 = arith.constant 0 : i32
    %c0_i32_0 = arith.constant 0 : i32
    %c0_i32_1 = arith.constant 0 : i32
    %c0_i32_2 = arith.constant 0 : i32
    return %c0_i32, %c0_i32_0, %c0_i32_1 : i32, i32, i32
  }
  func.func @transform_3(%arg0: i32) -> (i32, i32, i32) {
    %c0_i32 = arith.constant 0 : i32
    %c0_i32_0 = arith.constant 0 : i32
    %c0_i32_1 = arith.constant 0 : i32
    %c0_i32_2 = arith.constant 0 : i32
    return %c0_i32, %c0_i32_0, %c0_i32_1 : i32, i32, i32
  }
  func.func @transform_4(%arg0: i32) -> (i32, i32, i32) {
    %c0_i32 = arith.constant 0 : i32
    %c0_i32_0 = arith.constant 0 : i32
    %c0_i32_1 = arith.constant 0 : i32
    return %arg0, %c0_i32, %c0_i32_0 : i32, i32, i32
  }
}

</mosaic_0001>

<llo_original>
// kernel: gnn_forward.1
$region0: #{gnn_forward.1}
  #allocation0 [shape = 'u32[]', space=smem, size = 0x4, offset = 0x4, fixed_abs, tag = 'smem constant byte address 0x4 - core index']
  #allocation1 [shape = 'u32[144,128]{1,0:T(1,128)}', space=vmem, size = 0x12000, scoped, tag = 'internal scratch']
  %s0 = inlined_call_operand.vmem [shape: f32[2,16,128], index: 0, kind: input, shape index: {}]
  %s1 = inlined_call_operand.vmem [shape: f32[2,16,16], index: 1, kind: input, shape index: {}]
  %s2 = inlined_call_operand.vmem [shape: f32[2,128,128], index: 2, kind: input, shape index: {}]
  %s3 = inlined_call_operand.vmem [shape: f32[2,1,128], index: 3, kind: input, shape index: {}]
  %s4 = inlined_call_operand.vmem [shape: f32[2,16,128], index: 4, kind: output, shape index: {}]
  %s5 = sld [smem:[#allocation0]]
  $region26: #{gnn_forward.1} parent=0
    _
  %s7 = ssub.s32 1, %s5
  %s8 = scalar_select 0, %s7, %s5
  // Predicated region
  $region2: #{gnn_forward.1} parent=0 // pred_check
    _
  $region3: #{gnn_forward.1} parent=0 // pred_check_branch
    %10 = sbr.rel (0) target = $region5
  $region4: #{gnn_forward.1} parent=0 // pred_region
    _
  $region5: #{gnn_forward.1} parent=0 // pred_fallthru
    _
  // Predicated region
  $region6: #{gnn_forward.1} parent=0 // pred_check
    _
  $region7: #{gnn_forward.1} parent=0 // pred_check_branch
    %12 = sbr.rel (0) target = $region9
  $region8: #{gnn_forward.1} parent=0 // pred_region
    _
  $region9: #{gnn_forward.1} parent=0 // pred_fallthru
    _
  // Predicated region
  $region10: #{gnn_forward.1} parent=0 // pred_check
    _
  $region11: #{gnn_forward.1} parent=0 // pred_check_branch
    %14 = sbr.rel (0) target = $region13
  $region12: #{gnn_forward.1} parent=0 // pred_region
    _
  $region13: #{gnn_forward.1} parent=0 // pred_fallthru
    _
  // Predicated region
  $region14: #{gnn_forward.1} parent=0 // pred_check
    _
  $region15: #{gnn_forward.1} parent=0 // pred_check_branch
    %16 = sbr.rel (0) target = $region17
  $region16: #{gnn_forward.1} parent=0 // pred_region
    _
  $region17: #{gnn_forward.1} parent=0 // pred_fallthru
    _
  %v17 = vld [vmem:[%s0] sm:$0xff]
  %v18 = vld [vmem:[%s0 + $0x8] sm:$0xff]
  %v19 = vld [vmem:[%s0 + $0x10] sm:$0xff]
  %v20 = vld [vmem:[%s0 + $0x18] sm:$0xff]
  %v21 = vld [vmem:[%s2] sm:$0xff]
  %v22 = vld [vmem:[%s2 + $0x8] sm:$0xff]
  %v23 = vld [vmem:[%s2 + $0x10] sm:$0xff]
  %v24 = vld [vmem:[%s2 + $0x18] sm:$0xff]
  %v25 = vld [vmem:[%s2 + $0x20] sm:$0xff]
  %v26 = vld [vmem:[%s2 + $0x28] sm:$0xff]
  %v27 = vld [vmem:[%s2 + $0x30] sm:$0xff]
  %v28 = vld [vmem:[%s2 + $0x38] sm:$0xff]
  %v29 = vld [vmem:[%s2 + $0x40] sm:$0xff]
  %v30 = vld [vmem:[%s2 + $0x48] sm:$0xff]
  %v31 = vld [vmem:[%s2 + $0x50] sm:$0xff]
  %v32 = vld [vmem:[%s2 + $0x58] sm:$0xff]
  %v33 = vld [vmem:[%s2 + $0x60] sm:$0xff]
  %v34 = vld [vmem:[%s2 + $0x68] sm:$0xff]
  %v35 = vld [vmem:[%s2 + $0x70] sm:$0xff]
  %v36 = vld [vmem:[%s2 + $0x78] sm:$0xff]
  %v37 = vld [vmem:[%s3] sm:$0x1]
  %v39 = vlaneseq
  %v40 = vshrl.u32 %v39, 7
  %v41 = vsub.s32 0, %v40
  %v42 = vrot.slane %v37, %v41
  %44 = vmatprep.subr.mxu0 0.0
  %45 = vmatpush1.msra.mxu0 %v21
  %46 = vmatprep.subr.mxu0 0.0
  %47 = vmatpush1.msra.mxu0 %v22
  %48 = vmatprep.subr.mxu0 0.0
  %49 = vmatpush1.msra.mxu0 %v23
  %50 = vmatprep.subr.mxu0 0.0
  %51 = vmatpush1.msra.mxu0 %v24
  %52 = vmatprep.subr.mxu0 0.0
  %53 = vmatpush1.msra.mxu0 %v25
  %54 = vmatprep.subr.mxu0 0.0
  %55 = vmatpush1.msra.mxu0 %v26
  %56 = vmatprep.subr.mxu0 0.0
  %57 = vmatpush1.msra.mxu0 %v27
  %58 = vmatprep.subr.mxu0 0.0
  %59 = vmatpush1.msra.mxu0 %v28
  %60 = vmatprep.subr.mxu0 0.0
  %61 = vmatpush1.msra.mxu0 %v29
  %62 = vmatprep.subr.mxu0 0.0
  %63 = vmatpush1.msra.mxu0 %v30
  %64 = vmatprep.subr.mxu0 0.0
  %65 = vmatpush1.msra.mxu0 %v31
  %66 = vmatprep.subr.mxu0 0.0
  %67 = vmatpush1.msra.mxu0 %v32
  %68 = vmatprep.subr.mxu0 0.0
  %69 = vmatpush1.msra.mxu0 %v33
  %70 = vmatprep.subr.mxu0 0.0
  %71 = vmatpush1.msra.mxu0 %v34
  %72 = vmatprep.subr.mxu0 0.0
  %73 = vmatpush1.msra.mxu0 %v35
  %74 = vmatprep.subr.mxu0 0.0
  %75 = vmatpush1.msra.mxu0 %v36
  %76 = vmatprep.subr.mxu0 0.0
  %77 = vmatpush1.msra.mxu0 0.0
  %78 = vmatprep.subr.mxu0 0.0
  %79 = vmatpush1.msra.mxu0 0.0
  %80 = vmatprep.subr.mxu0 0.0
  %81 = vmatpush1.msra.mxu0 0.0
  %82 = vmatprep.subr.mxu0 0.0
  %83 = vmatpush1.msra.mxu0 0.0
  %84 = vmatprep.subr.mxu0 0.0
  %85 = vmatpush1.msra.mxu0 0.0
  %86 = vmatprep.subr.mxu0 0.0
  %87 = vmatpush1.msra.mxu0 0.0
  %88 = vmatprep.subr.mxu0 0.0
  %89 = vmatpush1.msra.mxu0 0.0
  %90 = vmatprep.subr.mxu0 0.0
  %91 = vmatpush1.msra.mxu0 0.0
  %92 = vmatprep.subr.mxu0 0.0
  %93 = vmatpush1.msra.mxu0 0.0
  %94 = vmatprep.subr.mxu0 0.0
  %95 = vmatpush1.msra.mxu0 0.0
  %96 = vmatprep.subr.mxu0 0.0
  %97 = vmatpush1.msra.mxu0 0.0
  %98 = vmatprep.subr.mxu0 0.0
  %99 = vmatpush1.msra.mxu0 0.0
  %100 = vmatprep.subr.mxu0 0.0
  %101 = vmatpush1.msra.mxu0 0.0
  %102 = vmatprep.subr.mxu0 0.0
  %103 = vmatpush1.msra.mxu0 0.0
  %104 = vmatprep.subr.mxu0 0.0
  %105 = vmatpush1.msra.mxu0 0.0
  %106 = vmatprep.subr.mxu0 0.0
  %107 = vmatpush1.msra.mxu0 0.0
  %108 = vmatprep.mubr.f32.mxu0 0.0
  %109 = vmatmul.mubr.f32.gmra.mrb[0].mxu0 %v17
  %v110 = vpop.f32.mrb[0].mxu0
  %v111 = vadd.f32 %v42, %v110
  %v112 = vpop.f32.mrb[0].mxu0
  %113 = vmatprep.mubr.f32.mxu0 0.0
  %114 = vmatmul.mubr.f32.gmra.mrb[0].mxu0 %v18
  %v115 = vpop.f32.mrb[0].mxu0
  %v116 = vadd.f32 %v42, %v115
  %v117 = vpop.f32.mrb[0].mxu0
  %118 = vmatprep.mubr.f32.mxu0 0.0
  %119 = vmatmul.mubr.f32.gmra.mrb[0].mxu0 %v19
  %v120 = vpop.f32.mrb[0].mxu0
  %v121 = vadd.f32 %v42, %v120
  %v122 = vpop.f32.mrb[0].mxu0
  %123 = vmatprep.mubr.f32.mxu0 0.0
  %124 = vmatmul.mubr.f32.gmra.mrb[0].mxu0 %v20
  %v125 = vpop.f32.mrb[0].mxu0
  %v126 = vadd.f32 %v42, %v125
  %v127 = vpop.f32.mrb[0].mxu0
  %128 = vdwg.mxu0
  %v129 = vmax.f32 %v111, 0.0
  %v130 = vmax.f32 %v116, 0.0
  %v131 = vmax.f32 %v121, 0.0
  %v132 = vmax.f32 %v126, 0.0
  %v133 = vld [vmem:[%s1] sm:$0xff]
  %v134 = vld [vmem:[%s1 + $0x8] sm:$0xff]
  %v135 = vld [vmem:[%s1 + $0x10] sm:$0xff]
  %v136 = vld [vmem:[%s1 + $0x18] sm:$0xff]
  %vm137 = vcmask 130048
  %v139 = vsel %vm137, %v133, 0
  %v142 = vsel %vm137, %v134, 0
  %144 = vmatprep.subr.mxu0 0.0
  %145 = vmatpush1.msra.mxu0 %v129
  %146 = vmatprep.subr.mxu0 0.0
  %147 = vmatpush1.msra.mxu0 %v130
  %148 = vmatprep.subr.mxu0 0.0
  %149 = vmatpush1.msra.mxu0 0.0
  %150 = vmatprep.subr.mxu0 0.0
  %151 = vmatpush1.msra.mxu0 0.0
  %152 = vmatprep.subr.mxu0 0.0
  %153 = vmatpush1.msra.mxu0 0.0
  %154 = vmatprep.subr.mxu0 0.0
  %155 = vmatpush1.msra.mxu0 0.0
  %156 = vmatprep.subr.mxu0 0.0
  %157 = vmatpush1.msra.mxu0 0.0
  %158 = vmatprep.subr.mxu0 0.0
  %159 = vmatpush1.msra.mxu0 0.0
  %160 = vmatprep.subr.mxu0 0.0
  %161 = vmatpush1.msra.mxu0 0.0
  %162 = vmatprep.subr.mxu0 0.0
  %163 = vmatpush1.msra.mxu0 0.0
  %164 = vmatprep.subr.mxu0 0.0
  %165 = vmatpush1.msra.mxu0 0.0
  %166 = vmatprep.subr.mxu0 0.0
  %167 = vmatpush1.msra.mxu0 0.0
  %168 = vmatprep.subr.mxu0 0.0
  %169 = vmatpush1.msra.mxu0 0.0
  %170 = vmatprep.subr.mxu0 0.0
  %171 = vmatpush1.msra.mxu0 0.0
  %172 = vmatprep.subr.mxu0 0.0
  %173 = vmatpush1.msra.mxu0 0.0
  %174 = vmatprep.subr.mxu0 0.0
  %175 = vmatpush1.msra.mxu0 0.0
  %176 = vmatprep.subr.mxu0 0.0
  %177 = vmatpush1.msra.mxu0 0.0
  %178 = vmatprep.subr.mxu0 0.0
  %179 = vmatpush1.msra.mxu0 0.0
  %180 = vmatprep.subr.mxu0 0.0
  %181 = vmatpush1.msra.mxu0 0.0
  %182 = vmatprep.subr.mxu0 0.0
  %183 = vmatpush1.msra.mxu0 0.0
  %184 = vmatprep.subr.mxu0 0.0
  %185 = vmatpush1.msra.mxu0 0.0
  %186 = vmatprep.subr.mxu0 0.0
  %187 = vmatpush1.msra.mxu0 0.0
  %188 = vmatprep.subr.mxu0 0.0
  %189 = vmatpush1.msra.mxu0 0.0
  %190 = vmatprep.subr.mxu0 0.0
  %191 = vmatpush1.msra.mxu0 0.0
  %192 = vmatprep.subr.mxu0 0.0
  %193 = vmatpush1.msra.mxu0 0.0
  %194 = vmatprep.subr.mxu0 0.0
  %195 = vmatpush1.msra.mxu0 0.0
  %196 = vmatprep.subr.mxu0 0.0
  %197 = vmatpush1.msra.mxu0 0.0
  %198 = vmatprep.subr.mxu0 0.0
  %199 = vmatpush1.msra.mxu0 0.0
  %200 = vmatprep.subr.mxu0 0.0
  %201 = vmatpush1.msra.mxu0 0.0
  %202 = vmatprep.subr.mxu0 0.0
  %203 = vmatpush1.msra.mxu0 0.0
  %204 = vmatprep.subr.mxu0 0.0
  %205 = vmatpush1.msra.mxu0 0.0
  %206 = vmatprep.subr.mxu0 0.0
  %207 = vmatpush1.msra.mxu0 0.0
  %208 = vmatprep.mubr.f32.mxu0 0.0
  %209 = vmatmul.mubr.f32.gmra.mrb[0].mxu0 %v139
  %v210 = vpop.f32.mrb[0].mxu0
  %v211 = vadd.f32 0.0, %v210
  %v212 = vpop.f32.mrb[0].mxu0
  %213 = vmatprep.mubr.f32.mxu0 0.0
  %214 = vmatmul.mubr.f32.gmra.mrb[0].mxu0 %v142
  %v215 = vpop.f32.mrb[0].mxu0
  %v216 = vadd.f32 0.0, %v215
  %v217 = vpop.f32.mrb[0].mxu0
  %218 = vdwg.mxu0
  %v220 = vsel %vm137, %v135, 0
  %v223 = vsel %vm137, %v136, 0
  %225 = vmatprep.subr.mxu0 0.0
  %226 = vmatpush1.msra.mxu0 %v131
  %227 = vmatprep.subr.mxu0 0.0
  %228 = vmatpush1.msra.mxu0 %v132
  %229 = vmatprep.subr.mxu0 0.0
  %230 = vmatpush1.msra.mxu0 0.0
  %231 = vmatprep.subr.mxu0 0.0
  %232 = vmatpush1.msra.mxu0 0.0
  %233 = vmatprep.subr.mxu0 0.0
  %234 = vmatpush1.msra.mxu0 0.0
  %235 = vmatprep.subr.mxu0 0.0
  %236 = vmatpush1.msra.mxu0 0.0
  %237 = vmatprep.subr.mxu0 0.0
  %238 = vmatpush1.msra.mxu0 0.0
  %239 = vmatprep.subr.mxu0 0.0
  %240 = vmatpush1.msra.mxu0 0.0
  %241 = vmatprep.subr.mxu0 0.0
  %242 = vmatpush1.msra.mxu0 0.0
  %243 = vmatprep.subr.mxu0 0.0
  %244 = vmatpush1.msra.mxu0 0.0
  %245 = vmatprep.subr.mxu0 0.0
  %246 = vmatpush1.msra.mxu0 0.0
  %247 = vmatprep.subr.mxu0 0.0
  %248 = vmatpush1.msra.mxu0 0.0
  %249 = vmatprep.subr.mxu0 0.0
  %250 = vmatpush1.msra.mxu0 0.0
  %251 = vmatprep.subr.mxu0 0.0
  %252 = vmatpush1.msra.mxu0 0.0
  %253 = vmatprep.subr.mxu0 0.0
  %254 = vmatpush1.msra.mxu0 0.0
  %255 = vmatprep.subr.mxu0 0.0
  %256 = vmatpush1.msra.mxu0 0.0
  %257 = vmatprep.subr.mxu0 0.0
  %258 = vmatpush1.msra.mxu0 0.0
  %259 = vmatprep.subr.mxu0 0.0
  %260 = vmatpush1.msra.mxu0 0.0
  %261 = vmatprep.subr.mxu0 0.0
  %262 = vmatpush1.msra.mxu0 0.0
  %263 = vmatprep.subr.mxu0 0.0
  %264 = vmatpush1.msra.mxu0 0.0
  %265 = vmatprep.subr.mxu0 0.0
  %266 = vmatpush1.msra.mxu0 0.0
  %267 = vmatprep.subr.mxu0 0.0
  %268 = vmatpush1.msra.mxu0 0.0
  %269 = vmatprep.subr.mxu0 0.0
  %270 = vmatpush1.msra.mxu0 0.0
  %271 = vmatprep.subr.mxu0 0.0
  %272 = vmatpush1.msra.mxu0 0.0
  %273 = vmatprep.subr.mxu0 0.0
  %274 = vmatpush1.msra.mxu0 0.0
  %275 = vmatprep.subr.mxu0 0.0
  %276 = vmatpush1.msra.mxu0 0.0
  %277 = vmatprep.subr.mxu0 0.0
  %278 = vmatpush1.msra.mxu0 0.0
  %279 = vmatprep.subr.mxu0 0.0
  %280 = vmatpush1.msra.mxu0 0.0
  %281 = vmatprep.subr.mxu0 0.0
  %282 = vmatpush1.msra.mxu0 0.0
  %283 = vmatprep.subr.mxu0 0.0
  %284 = vmatpush1.msra.mxu0 0.0
  %285 = vmatprep.subr.mxu0 0.0
  %286 = vmatpush1.msra.mxu0 0.0
  %287 = vmatprep.subr.mxu0 0.0
  %288 = vmatpush1.msra.mxu0 0.0
  %289 = vmatprep.mubr.f32.mxu0 0.0
  %290 = vmatmul.mubr.f32.gmra.mrb[0].mxu0 %v220
  %v291 = vpop.f32.mrb[0].mxu0
  %v292 = vadd.f32 0.0, %v291
  %v293 = vpop.f32.mrb[0].mxu0
  %294 = vmatprep.mubr.f32.mxu0 0.0
  %295 = vmatmul.mubr.f32.gmra.mrb[0].mxu0 %v223
  %v296 = vpop.f32.mrb[0].mxu0
  %v297 = vadd.f32 0.0, %v296
  %v298 = vpop.f32.mrb[0].mxu0
  %299 = vdwg.mxu0
  %s300 = scalar_lea.vmem %s2, 128
  %v301 = vld [vmem:[%s300] sm:$0xff]
  %v302 = vld [vmem:[%s300 + $0x8] sm:$0xff]
  %v303 = vld [vmem:[%s300 + $0x10] sm:$0xff]
  %v304 = vld [vmem:[%s300 + $0x18] sm:$0xff]
  %v305 = vld [vmem:[%s300 + $0x20] sm:$0xff]
  %v306 = vld [vmem:[%s300 + $0x28] sm:$0xff]
  %v307 = vld [vmem:[%s300 + $0x30] sm:$0xff]
  %v308 = vld [vmem:[%s300 + $0x38] sm:$0xff]
  %v309 = vld [vmem:[%s300 + $0x40] sm:$0xff]
  %v310 = vld [vmem:[%s300 + $0x48] sm:$0xff]
  %v311 = vld [vmem:[%s300 + $0x50] sm:$0xff]
  %v312 = vld [vmem:[%s300 + $0x58] sm:$0xff]
  %v313 = vld [vmem:[%s300 + $0x60] sm:$0xff]
  %v314 = vld [vmem:[%s300 + $0x68] sm:$0xff]
  %v315 = vld [vmem:[%s300 + $0x70] sm:$0xff]
  %v316 = vld [vmem:[%s300 + $0x78] sm:$0xff]
  %s317 = scalar_lea.vmem %s3, 1
  %v318 = vld [vmem:[%s317] sm:$0x1]
  %v320 = vlaneseq
  %v321 = vshrl.u32 %v320, 7
  %v322 = vsub.s32 0, %v321
  %v323 = vrot.slane %v318, %v322
  %325 = vmatprep.subr.mxu0 0.0
  %326 = vmatpush1.msra.mxu0 %v301
  %327 = vmatprep.subr.mxu0 0.0
  %328 = vmatpush1.msra.mxu0 %v302
  %329 = vmatprep.subr.mxu0 0.0
  %330 = vmatpush1.msra.mxu0 %v303
  %331 = vmatprep.subr.mxu0 0.0
  %332 = vmatpush1.msra.mxu0 %v304
  %333 = vmatprep.subr.mxu0 0.0
  %334 = vmatpush1.msra.mxu0 %v305
  %335 = vmatprep.subr.mxu0 0.0
  %336 = vmatpush1.msra.mxu0 %v306
  %337 = vmatprep.subr.mxu0 0.0
  %338 = vmatpush1.msra.mxu0 %v307
  %339 = vmatprep.subr.mxu0 0.0
  %340 = vmatpush1.msra.mxu0 %v308
  %341 = vmatprep.subr.mxu0 0.0
  %342 = vmatpush1.msra.mxu0 %v309
  %343 = vmatprep.subr.mxu0 0.0
  %344 = vmatpush1.msra.mxu0 %v310
  %345 = vmatprep.subr.mxu0 0.0
  %346 = vmatpush1.msra.mxu0 %v311
  %347 = vmatprep.subr.mxu0 0.0
  %348 = vmatpush1.msra.mxu0 %v312
  %349 = vmatprep.subr.mxu0 0.0
  %350 = vmatpush1.msra.mxu0 %v313
  %351 = vmatprep.subr.mxu0 0.0
  %352 = vmatpush1.msra.mxu0 %v314
  %353 = vmatprep.subr.mxu0 0.0
  %354 = vmatpush1.msra.mxu0 %v315
  %355 = vmatprep.subr.mxu0 0.0
  %356 = vmatpush1.msra.mxu0 %v316
  %357 = vmatprep.subr.mxu0 0.0
  %358 = vmatpush1.msra.mxu0 0.0
  %359 = vmatprep.subr.mxu0 0.0
  %360 = vmatpush1.msra.mxu0 0.0
  %361 = vmatprep.subr.mxu0 0.0
  %362 = vmatpush1.msra.mxu0 0.0
  %363 = vmatprep.subr.mxu0 0.0
  %364 = vmatpush1.msra.mxu0 0.0
  %365 = vmatprep.subr.mxu0 0.0
  %366 = vmatpush1.msra.mxu0 0.0
  %367 = vmatprep.subr.mxu0 0.0
  %368 = vmatpush1.msra.mxu0 0.0
  %369 = vmatprep.subr.mxu0 0.0
  %370 = vmatpush1.msra.mxu0 0.0
  %371 = vmatprep.subr.mxu0 0.0
  %372 = vmatpush1.msra.mxu0 0.0
  %373 = vmatprep.subr.mxu0 0.0
  %374 = vmatpush1.msra.mxu0 0.0
  %375 = vmatprep.subr.mxu0 0.0
  %376 = vmatpush1.msra.mxu0 0.0
  %377 = vmatprep.subr.mxu0 0.0
  %378 = vmatpush1.msra.mxu0 0.0
  %379 = vmatprep.subr.mxu0 0.0
  %380 = vmatpush1.msra.mxu0 0.0
  %381 = vmatprep.subr.mxu0 0.0
  %382 = vmatpush1.msra.mxu0 0.0
  %383 = vmatprep.subr.mxu0 0.0
  %384 = vmatpush1.msra.mxu0 0.0
  %385 = vmatprep.subr.mxu0 0.0
  %386 = vmatpush1.msra.mxu0 0.0
  %387 = vmatprep.subr.mxu0 0.0
  %388 = vmatpush1.msra.mxu0 0.0
  %389 = vmatprep.mubr.f32.mxu0 0.0
  %390 = vmatmul.mubr.f32.gmra.mrb[0].mxu0 %v211
  %v391 = vpop.f32.mrb[0].mxu0
  %v392 = vadd.f32 %v323, %v391
  %v393 = vpop.f32.mrb[0].mxu0
  %394 = vmatprep.mubr.f32.mxu0 0.0
  %395 = vmatmul.mubr.f32.gmra.mrb[0].mxu0 %v216
  %v396 = vpop.f32.mrb[0].mxu0
  %v397 = vadd.f32 %v323, %v396
  %v398 = vpop.f32.mrb[0].mxu0
  %399 = vmatprep.mubr.f32.mxu0 0.0
  %400 = vmatmul.mubr.f32.gmra.mrb[0].mxu0 %v292
  %v401 = vpop.f32.mrb[0].mxu0
  %v402 = vadd.f32 %v323, %v401
  %v403 = vpop.f32.mrb[0].mxu0
  %404 = vmatprep.mubr.f32.mxu0 0.0
  %405 = vmatmul.mubr.f32.gmra.mrb[0].mxu0 %v297
  %v406 = vpop.f32.mrb[0].mxu0
  %v407 = vadd.f32 %v323, %v406
  %v408 = vpop.f32.mrb[0].mxu0
  %409 = vdwg.mxu0
  %v410 = vmax.f32 %v392, 0.0
  %v411 = vmax.f32 %v397, 0.0
  %v412 = vmax.f32 %v402, 0.0
  %v413 = vmax.f32 %v407, 0.0
  %v414 = vld [vmem:[%s1] sm:$0xff]
  %v415 = vld [vmem:[%s1 + $0x8] sm:$0xff]
  %v416 = vld [vmem:[%s1 + $0x10] sm:$0xff]
  %v417 = vld [vmem:[%s1 + $0x18] sm:$0xff]
  %v419 = vsel %vm137, %v414, 0
  %v422 = vsel %vm137, %v415, 0
  %424 = vmatprep.subr.mxu0 0.0
  %425 = vmatpush1.msra.mxu0 %v410
  %426 = vmatprep.subr.mxu0 0.0
  %427 = vmatpush1.msra.mxu0 %v411
  %428 = vmatprep.subr.mxu0 0.0
  %429 = vmatpush1.msra.mxu0 0.0
  %430 = vmatprep.subr.mxu0 0.0
  %431 = vmatpush1.msra.mxu0 0.0
  %432 = vmatprep.subr.mxu0 0.0
  %433 = vmatpush1.msra.mxu0 0.0
  %434 = vmatprep.subr.mxu0 0.0
  %435 = vmatpush1.msra.mxu0 0.0
  %436 = vmatprep.subr.mxu0 0.0
  %437 = vmatpush1.msra.mxu0 0.0
  %438 = vmatprep.subr.mxu0 0.0
  %439 = vmatpush1.msra.mxu0 0.0
  %440 = vmatprep.subr.mxu0 0.0
  %441 = vmatpush1.msra.mxu0 0.0
  %442 = vmatprep.subr.mxu0 0.0
  %443 = vmatpush1.msra.mxu0 0.0
  %444 = vmatprep.subr.mxu0 0.0
  %445 = vmatpush1.msra.mxu0 0.0
  %446 = vmatprep.subr.mxu0 0.0
  %447 = vmatpush1.msra.mxu0 0.0
  %448 = vmatprep.subr.mxu0 0.0
  %449 = vmatpush1.msra.mxu0 0.0
  %450 = vmatprep.subr.mxu0 0.0
  %451 = vmatpush1.msra.mxu0 0.0
  %452 = vmatprep.subr.mxu0 0.0
  %453 = vmatpush1.msra.mxu0 0.0
  %454 = vmatprep.subr.mxu0 0.0
  %455 = vmatpush1.msra.mxu0 0.0
  %456 = vmatprep.subr.mxu0 0.0
  %457 = vmatpush1.msra.mxu0 0.0
  %458 = vmatprep.subr.mxu0 0.0
  %459 = vmatpush1.msra.mxu0 0.0
  %460 = vmatprep.subr.mxu0 0.0
  %461 = vmatpush1.msra.mxu0 0.0
  %462 = vmatprep.subr.mxu0 0.0
  %463 = vmatpush1.msra.mxu0 0.0
  %464 = vmatprep.subr.mxu0 0.0
  %465 = vmatpush1.msra.mxu0 0.0
  %466 = vmatprep.subr.mxu0 0.0
  %467 = vmatpush1.msra.mxu0 0.0
  %468 = vmatprep.subr.mxu0 0.0
  %469 = vmatpush1.msra.mxu0 0.0
  %470 = vmatprep.subr.mxu0 0.0
  %471 = vmatpush1.msra.mxu0 0.0
  %472 = vmatprep.subr.mxu0 0.0
  %473 = vmatpush1.msra.mxu0 0.0
  %474 = vmatprep.subr.mxu0 0.0
  %475 = vmatpush1.msra.mxu0 0.0
  %476 = vmatprep.subr.mxu0 0.0
  %477 = vmatpush1.msra.mxu0 0.0
  %478 = vmatprep.subr.mxu0 0.0
  %479 = vmatpush1.msra.mxu0 0.0
  %480 = vmatprep.subr.mxu0 0.0
  %481 = vmatpush1.msra.mxu0 0.0
  %482 = vmatprep.subr.mxu0 0.0
  %483 = vmatpush1.msra.mxu0 0.0
  %484 = vmatprep.subr.mxu0 0.0
  %485 = vmatpush1.msra.mxu0 0.0
  %486 = vmatprep.subr.mxu0 0.0
  %487 = vmatpush1.msra.mxu0 0.0
  %488 = vmatprep.mubr.f32.mxu0 0.0
  %489 = vmatmul.mubr.f32.gmra.mrb[0].mxu0 %v419
  %v490 = vpop.f32.mrb[0].mxu0
  %v491 = vadd.f32 0.0, %v490
  %v492 = vpop.f32.mrb[0].mxu0
  %493 = vmatprep.mubr.f32.mxu0 0.0
  %494 = vmatmul.mubr.f32.gmra.mrb[0].mxu0 %v422
  %v495 = vpop.f32.mrb[0].mxu0
  %v496 = vadd.f32 0.0, %v495
  %v497 = vpop.f32.mrb[0].mxu0
  %498 = vdwg.mxu0
  %v500 = vsel %vm137, %v416, 0
  %v503 = vsel %vm137, %v417, 0
  %505 = vmatprep.subr.mxu0 0.0
  %506 = vmatpush1.msra.mxu0 %v412
  %507 = vmatprep.subr.mxu0 0.0
  %508 = vmatpush1.msra.mxu0 %v413
  %509 = vmatprep.subr.mxu0 0.0
  %510 = vmatpush1.msra.mxu0 0.0
  %511 = vmatprep.subr.mxu0 0.0
  %512 = vmatpush1.msra.mxu0 0.0
  %513 = vmatprep.subr.mxu0 0.0
  %514 = vmatpush1.msra.mxu0 0.0
  %515 = vmatprep.subr.mxu0 0.0
  %516 = vmatpush1.msra.mxu0 0.0
  %517 = vmatprep.subr.mxu0 0.0
  %518 = vmatpush1.msra.mxu0 0.0
  %519 = vmatprep.subr.mxu0 0.0
  %520 = vmatpush1.msra.mxu0 0.0
  %521 = vmatprep.subr.mxu0 0.0
  %522 = vmatpush1.msra.mxu0 0.0
  %523 = vmatprep.subr.mxu0 0.0
  %524 = vmatpush1.msra.mxu0 0.0
  %525 = vmatprep.subr.mxu0 0.0
  %526 = vmatpush1.msra.mxu0 0.0
  %527 = vmatprep.subr.mxu0 0.0
  %528 = vmatpush1.msra.mxu0 0.0
  %529 = vmatprep.subr.mxu0 0.0
  %530 = vmatpush1.msra.mxu0 0.0
  %531 = vmatprep.subr.mxu0 0.0
  %532 = vmatpush1.msra.mxu0 0.0
  %533 = vmatprep.subr.mxu0 0.0
  %534 = vmatpush1.msra.mxu0 0.0
  %535 = vmatprep.subr.mxu0 0.0
  %536 = vmatpush1.msra.mxu0 0.0
  %537 = vmatprep.subr.mxu0 0.0
  %538 = vmatpush1.msra.mxu0 0.0
  %539 = vmatprep.subr.mxu0 0.0
  %540 = vmatpush1.msra.mxu0 0.0
  %541 = vmatprep.subr.mxu0 0.0
  %542 = vmatpush1.msra.mxu0 0.0
  %543 = vmatprep.subr.mxu0 0.0
  %544 = vmatpush1.msra.mxu0 0.0
  %545 = vmatprep.subr.mxu0 0.0
  %546 = vmatpush1.msra.mxu0 0.0
  %547 = vmatprep.subr.mxu0 0.0
  %548 = vmatpush1.msra.mxu0 0.0
  %549 = vmatprep.subr.mxu0 0.0
  %550 = vmatpush1.msra.mxu0 0.0
  %551 = vmatprep.subr.mxu0 0.0
  %552 = vmatpush1.msra.mxu0 0.0
  %553 = vmatprep.subr.mxu0 0.0
  %554 = vmatpush1.msra.mxu0 0.0
  %555 = vmatprep.subr.mxu0 0.0
  %556 = vmatpush1.msra.mxu0 0.0
  %557 = vmatprep.subr.mxu0 0.0
  %558 = vmatpush1.msra.mxu0 0.0
  %559 = vmatprep.subr.mxu0 0.0
  %560 = vmatpush1.msra.mxu0 0.0
  %561 = vmatprep.subr.mxu0 0.0
  %562 = vmatpush1.msra.mxu0 0.0
  %563 = vmatprep.subr.mxu0 0.0
  %564 = vmatpush1.msra.mxu0 0.0
  %565 = vmatprep.subr.mxu0 0.0
  %566 = vmatpush1.msra.mxu0 0.0
  %567 = vmatprep.subr.mxu0 0.0
  %568 = vmatpush1.msra.mxu0 0.0
  %569 = vmatprep.mubr.f32.mxu0 0.0
  %570 = vmatmul.mubr.f32.gmra.mrb[0].mxu0 %v500
  %v571 = vpop.f32.mrb[0].mxu0
  %v572 = vadd.f32 0.0, %v571
  %v573 = vpop.f32.mrb[0].mxu0
  %574 = vmatprep.mubr.f32.mxu0 0.0
  %575 = vmatmul.mubr.f32.gmra.mrb[0].mxu0 %v503
  %v576 = vpop.f32.mrb[0].mxu0
  %v577 = vadd.f32 0.0, %v576
  %v578 = vpop.f32.mrb[0].mxu0
  %579 = vdwg.mxu0
  %580 = vst [vmem:[%s4] sm:$0xff] %v491
  %581 = vst [vmem:[%s4 + $0x8] sm:$0xff] %v496
  %582 = vst [vmem:[%s4 + $0x10] sm:$0xff] %v572
  %583 = vst [vmem:[%s4 + $0x18] sm:$0xff] %v577
  // Predicated region
  $region18: #{gnn_forward.1} parent=0 // pred_check
    _
  $region19: #{gnn_forward.1} parent=0 // pred_check_branch
    %585 = sbr.rel (0) target = $region21
  $region20: #{gnn_forward.1} parent=0 // pred_region
    _
  $region21: #{gnn_forward.1} parent=0 // pred_fallthru
    _
  // Predicated region
  $region22: #{gnn_forward.1} parent=0 // pred_check
    _
  $region23: #{gnn_forward.1} parent=0 // pred_check_branch
    %587 = sbr.rel (0) target = $region25
  $region24: #{gnn_forward.1} parent=0 // pred_region
    _
  $region25: #{gnn_forward.1} parent=0 // pred_fallthru
    _

</llo_original>
